<compile_context>
chip_gen: v7x
topology: tpu7x:2x2x1
jax: 0.10.0
libtpu: 0.0.40
codegen_flags: <defaults>
</compile_context>

<pallas_src>
import jax
import jax.numpy as jnp
from jax.experimental import pallas as pl
from jax.experimental.pallas import tpu as pltpu


def _round_up(x, m):
    return (x + m - 1) // m * m


def fasttext_kernel(ids_ref, fused_ref, b1_ref, w2_ref, b2_ref, out_ref):
    # ids_ref  : (bm, L)  int32
    # fused_ref: (Vp, Hp) bf16   (= embedding_matrix @ (W1 / L), zero-padded)
    # b1_ref   : (1, Hp)  f32
    # w2_ref   : (Hp, Cp) bf16
    # b2_ref   : (1, Cp)  f32
    # out_ref  : (bm, Cp) f32
    bm, L = ids_ref.shape
    Vp = fused_ref.shape[0]

    ids = ids_ref[...]                                                 # (bm, L) int32
    vocab_iota = jax.lax.broadcasted_iota(jnp.int32, (bm, Vp), 1)      # lane = vocab id

    # EmbeddingBag as counts @ table: accumulate counts with an unrolled loop over the
    # bag length.  Live state stays (bm, Vp); counts are small exact integers.
    counts = (ids[:, 0:1] == vocab_iota).astype(jnp.float32)
    for l in range(1, L):
        counts = counts + (ids[:, l:l + 1] == vocab_iota).astype(jnp.float32)

    # fused already contains the 1/L mean factor and W1.
    h = jnp.dot(counts.astype(fused_ref.dtype), fused_ref[...],
                preferred_element_type=jnp.float32) + b1_ref[...]      # (bm, Hp) f32
    h = jnp.maximum(h, 0.0)                                            # ReLU

    out = jnp.dot(h.astype(w2_ref.dtype), w2_ref[...],
                  preferred_element_type=jnp.float32) + b2_ref[...]    # (bm, Cp) f32
    out_ref[...] = out.astype(out_ref.dtype)


def fasttext_forward(input_ids, embedding_matrix, w1, b1, w2, b2, *,
                     bm=None, param_dtype=jnp.bfloat16):
    """input_ids: (B, L) int; embedding_matrix: (V, E); w1: (E, H); b1: (H,);
    w2: (H, C); b2: (C,).  Linear weights are stored transposed vs PyTorch (x @ W)."""
    B, L = input_ids.shape
    V, E = embedding_matrix.shape
    H = w1.shape[1]
    C = w2.shape[1]
    assert L <= 256, "bf16 counts are exact only for bag length <= 256"

    # ---- pre-fuse EmbeddingBag-mean with the first Linear (both are linear) ----
    fused = embedding_matrix.astype(jnp.float32) @ (w1.astype(jnp.float32) / float(L))

    # ---- lane-pad the GEMM operands to 128 (lane-dense matmuls & unmasked stores) ----
    Vp = _round_up(V, 128)
    Hp = _round_up(H, 128)
    Cp = _round_up(C, 128)

    fused_p = jnp.zeros((Vp, Hp), param_dtype).at[:V, :H].set(fused.astype(param_dtype))
    b1_p = jnp.zeros((1, Hp), jnp.float32).at[:, :H].set(
        b1.reshape(1, H).astype(jnp.float32))
    w2_p = jnp.zeros((Hp, Cp), param_dtype).at[:H, :C].set(w2.astype(param_dtype))
    b2_p = jnp.zeros((1, Cp), jnp.float32).at[:, :C].set(
        b2.reshape(1, C).astype(jnp.float32))

    # ---- batch tiling: one big tile; only very large batches split into >=1024 tiles ----
    if bm is None:
        bm = min(1024, _round_up(max(B, 16), 16))
    B_pad = _round_up(B, bm)
    ids = input_ids.astype(jnp.int32)
    if B_pad != B:
        ids = jnp.zeros((B_pad, L), jnp.int32).at[:B].set(ids)

    grid = (B_pad // bm,)

    # ---- VMEM budget sanity check (v7x has 64 MiB VMEM vs 128 MiB on v5e/v6e) ----
    itemsize = jnp.dtype(param_dtype).itemsize
    resident_bytes = (fused_p.size * itemsize + w2_p.size * itemsize
                      + b1_p.size * 4 + b2_p.size * 4)
    per_step_bytes = bm * L * 4 + bm * Cp * 4
    vmem_needed = 2 * (resident_bytes + per_step_bytes)   # double-buffer upper bound
    try:
        vmem_cap = pltpu.get_tpu_info().vmem_capacity_bytes
    except Exception:
        vmem_cap = 64 * 1024 * 1024
    assert vmem_needed < vmem_cap, (
        f"resident weights + tiles ({vmem_needed} B) exceed VMEM ({vmem_cap} B)")
    # TODO(synk): vocabularies whose fused (V, H) table does not fit VMEM would need a
    # scalar-prefetch / manual-DMA gather path instead of the resident counts@table matmul.

    flops = 2 * B_pad * (Vp * Hp + Hp * Cp) + B_pad * L * Vp
    bytes_accessed = ids.size * 4 + resident_bytes + B_pad * Cp * 4

    out_padded = pl.pallas_call(
        fasttext_kernel,
        out_shape=jax.ShapeDtypeStruct((B_pad, Cp), jnp.float32),
        grid_spec=pltpu.PrefetchScalarGridSpec(
            num_scalar_prefetch=0,
            grid=grid,
            in_specs=[
                pl.BlockSpec((bm, L), lambda i: (i, 0)),    # token ids (per-tile DMA)
                pl.BlockSpec((Vp, Hp), lambda i: (0, 0)),   # fused emb@W1/L (resident)
                pl.BlockSpec((1, Hp), lambda i: (0, 0)),    # b1             (resident)
                pl.BlockSpec((Hp, Cp), lambda i: (0, 0)),   # W2             (resident)
                pl.BlockSpec((1, Cp), lambda i: (0, 0)),    # b2             (resident)
            ],
            out_specs=pl.BlockSpec((bm, Cp), lambda i: (i, 0)),  # lane-dense output
        ),
        compiler_params=pltpu.CompilerParams(
            dimension_semantics=("parallel",),   # batch axis; shards across TCs on v7x
            vmem_limit_bytes=32 * 1024 * 1024,
        ),
        cost_estimate=pl.CostEstimate(
            flops=flops, transcendentals=0, bytes_accessed=bytes_accessed),
    )(ids, fused_p, b1_p, w2_p, b2_p)

    return out_padded[:B, :C]


def reference_forward(input_ids, embedding_matrix, w1, b1, w2, b2):
    emb = embedding_matrix.astype(jnp.float32)
    embed = jnp.mean(emb[input_ids], axis=1)                 # EmbeddingBag(mode='mean')
    h = jnp.maximum(embed @ w1.astype(jnp.float32) + b1.reshape(1, -1), 0.0)
    return h @ w2.astype(jnp.float32) + b2.reshape(1, -1)


if __name__ == "__main__":
    # Small, module-consistent shapes.
    VOCAB = 50        # vocab_size (embedding_matrix.shape[0])
    EMBED = 128       # embed_dim  (embedding_matrix.shape[1])
    HIDDEN = 100      # fixed in the module
    N_CLASS = 4       # params.n_class
    B, L = 16, 8      # batch, seq_max_length

    key = jax.random.PRNGKey(0)
    k_emb, k_w1, k_b1, k_w2, k_b2, k_ids = jax.random.split(key, 6)

    embedding_matrix = jax.random.normal(k_emb, (VOCAB, EMBED), jnp.float32)
    # Linear weights stored transposed vs PyTorch (kernel does x @ W).
    w1 = jax.random.normal(k_w1, (EMBED, HIDDEN), jnp.float32) * 0.05
    b1 = jax.random.normal(k_b1, (HIDDEN,), jnp.float32) * 0.05
    w2 = jax.random.normal(k_w2, (HIDDEN, N_CLASS), jnp.float32) * 0.05
    b2 = jax.random.normal(k_b2, (N_CLASS,), jnp.float32) * 0.05

    input_ids = jax.random.randint(k_ids, (B, L), 0, VOCAB, jnp.int32)

    out = fasttext_forward(input_ids, embedding_matrix, w1, b1, w2, b2)
    out = jax.block_until_ready(out)

    ref = reference_forward(input_ids, embedding_matrix, w1, b1, w2, b2)

    assert out.shape == (B, N_CLASS), out.shape
    assert jnp.allclose(out, ref, atol=2e-2, rtol=2e-2), (
        "mismatch vs reference", float(jnp.max(jnp.abs(out - ref))))

    print("KERNEL_OK")
</pallas_src>

<mosaic_0001>
module attributes {stable_mosaic.version = 11 : i64} {
  func.func @fasttext_kernel(%arg0: i32, %arg1: memref<16x8xi32, #tpu.memory_space<vmem>>, %arg2: memref<128x128xbf16, #tpu.memory_space<vmem>>, %arg3: memref<1x128xf32, #tpu.memory_space<vmem>>, %arg4: memref<128x128xbf16, #tpu.memory_space<vmem>>, %arg5: memref<1x128xf32, #tpu.memory_space<vmem>>, %arg6: memref<16x128xf32, #tpu.memory_space<vmem>>) attributes {dimension_semantics = [#tpu.dimension_semantics<parallel>], iteration_bounds = array<i64: 1>, scalar_prefetch = 0 : i64, scratch_operands = 0 : i64, tpu.core_type = #tpu.core_type<tc>, window_params = [{transform_indices = @transform_0, window_bounds = array<i64: 16, 8>}, {pipeline_mode = #tpu.pipeline_mode<synchronous>, transform_indices = @transform_1, window_bounds = array<i64: 128, 128>}, {pipeline_mode = #tpu.pipeline_mode<synchronous>, transform_indices = @transform_2, window_bounds = array<i64: 1, 128>}, {pipeline_mode = #tpu.pipeline_mode<synchronous>, transform_indices = @transform_3, window_bounds = array<i64: 128, 128>}, {pipeline_mode = #tpu.pipeline_mode<synchronous>, transform_indices = @transform_4, window_bounds = array<i64: 1, 128>}, {transform_indices = @transform_5, window_bounds = array<i64: 16, 128>}]} {
    %c0 = arith.constant 0 : index
    %c0_0 = arith.constant 0 : index
    %0 = vector.load %arg1[%c0, %c0_0] : memref<16x8xi32, #tpu.memory_space<vmem>>, vector<16x8xi32>
    %1 = tpu.iota {dimensions = array<i32: 1>} : vector<16x128xi32>
    %2 = vector.extract_strided_slice %0 {offsets = [0, 0], sizes = [16, 1], strides = [1, 1]} : vector<16x8xi32> to vector<16x1xi32>
    %3 = vector.broadcast %2 : vector<16x1xi32> to vector<16x128xi32>
    %4 = arith.cmpi eq, %3, %1 : vector<16x128xi32>
    %5 = arith.extui %4 : vector<16x128xi1> to vector<16x128xi32>
    %6 = arith.sitofp %5 : vector<16x128xi32> to vector<16x128xf32>
    %7 = vector.extract_strided_slice %0 {offsets = [0, 1], sizes = [16, 1], strides = [1, 1]} : vector<16x8xi32> to vector<16x1xi32>
    %8 = vector.broadcast %7 : vector<16x1xi32> to vector<16x128xi32>
    %9 = arith.cmpi eq, %8, %1 : vector<16x128xi32>
    %10 = arith.extui %9 : vector<16x128xi1> to vector<16x128xi32>
    %11 = arith.sitofp %10 : vector<16x128xi32> to vector<16x128xf32>
    %12 = arith.addf %6, %11 : vector<16x128xf32>
    %13 = vector.extract_strided_slice %0 {offsets = [0, 2], sizes = [16, 1], strides = [1, 1]} : vector<16x8xi32> to vector<16x1xi32>
    %14 = vector.broadcast %13 : vector<16x1xi32> to vector<16x128xi32>
    %15 = arith.cmpi eq, %14, %1 : vector<16x128xi32>
    %16 = arith.extui %15 : vector<16x128xi1> to vector<16x128xi32>
    %17 = arith.sitofp %16 : vector<16x128xi32> to vector<16x128xf32>
    %18 = arith.addf %12, %17 : vector<16x128xf32>
    %19 = vector.extract_strided_slice %0 {offsets = [0, 3], sizes = [16, 1], strides = [1, 1]} : vector<16x8xi32> to vector<16x1xi32>
    %20 = vector.broadcast %19 : vector<16x1xi32> to vector<16x128xi32>
    %21 = arith.cmpi eq, %20, %1 : vector<16x128xi32>
    %22 = arith.extui %21 : vector<16x128xi1> to vector<16x128xi32>
    %23 = arith.sitofp %22 : vector<16x128xi32> to vector<16x128xf32>
    %24 = arith.addf %18, %23 : vector<16x128xf32>
    %25 = vector.extract_strided_slice %0 {offsets = [0, 4], sizes = [16, 1], strides = [1, 1]} : vector<16x8xi32> to vector<16x1xi32>
    %26 = vector.broadcast %25 : vector<16x1xi32> to vector<16x128xi32>
    %27 = arith.cmpi eq, %26, %1 : vector<16x128xi32>
    %28 = arith.extui %27 : vector<16x128xi1> to vector<16x128xi32>
    %29 = arith.sitofp %28 : vector<16x128xi32> to vector<16x128xf32>
    %30 = arith.addf %24, %29 : vector<16x128xf32>
    %31 = vector.extract_strided_slice %0 {offsets = [0, 5], sizes = [16, 1], strides = [1, 1]} : vector<16x8xi32> to vector<16x1xi32>
    %32 = vector.broadcast %31 : vector<16x1xi32> to vector<16x128xi32>
    %33 = arith.cmpi eq, %32, %1 : vector<16x128xi32>
    %34 = arith.extui %33 : vector<16x128xi1> to vector<16x128xi32>
    %35 = arith.sitofp %34 : vector<16x128xi32> to vector<16x128xf32>
    %36 = arith.addf %30, %35 : vector<16x128xf32>
    %37 = vector.extract_strided_slice %0 {offsets = [0, 6], sizes = [16, 1], strides = [1, 1]} : vector<16x8xi32> to vector<16x1xi32>
    %38 = vector.broadcast %37 : vector<16x1xi32> to vector<16x128xi32>
    %39 = arith.cmpi eq, %38, %1 : vector<16x128xi32>
    %40 = arith.extui %39 : vector<16x128xi1> to vector<16x128xi32>
    %41 = arith.sitofp %40 : vector<16x128xi32> to vector<16x128xf32>
    %42 = arith.addf %36, %41 : vector<16x128xf32>
    %43 = vector.extract_strided_slice %0 {offsets = [0, 7], sizes = [16, 1], strides = [1, 1]} : vector<16x8xi32> to vector<16x1xi32>
    %44 = vector.broadcast %43 : vector<16x1xi32> to vector<16x128xi32>
    %45 = arith.cmpi eq, %44, %1 : vector<16x128xi32>
    %46 = arith.extui %45 : vector<16x128xi1> to vector<16x128xi32>
    %47 = arith.sitofp %46 : vector<16x128xi32> to vector<16x128xf32>
    %48 = arith.addf %42, %47 : vector<16x128xf32>
    %49 = arith.truncf %48 : vector<16x128xf32> to vector<16x128xbf16>
    %c0_1 = arith.constant 0 : index
    %c0_2 = arith.constant 0 : index
    %50 = vector.load %arg2[%c0_1, %c0_2] : memref<128x128xbf16, #tpu.memory_space<vmem>>, vector<128x128xbf16>
    %cst = arith.constant dense<0.000000e+00> : vector<16x128xf32>
    %51 = tpu.matmul %49, %50, %cst {dimension_numbers = #tpu.dot_dimension_numbers<[1], [0], [0], [1], [0, 0, 1, 1], [], []>} : vector<16x128xbf16>, vector<128x128xbf16>, vector<16x128xf32> -> vector<16x128xf32>
    %c0_3 = arith.constant 0 : index
    %c0_4 = arith.constant 0 : index
    %52 = vector.load %arg3[%c0_3, %c0_4] : memref<1x128xf32, #tpu.memory_space<vmem>>, vector<1x128xf32>
    %53 = vector.broadcast %52 : vector<1x128xf32> to vector<16x128xf32>
    %54 = arith.addf %51, %53 : vector<16x128xf32>
    %cst_5 = arith.constant 0.000000e+00 : f32
    %55 = vector.broadcast %cst_5 : f32 to vector<16x128xf32>
    %56 = arith.maximumf %54, %55 : vector<16x128xf32>
    %57 = arith.truncf %56 : vector<16x128xf32> to vector<16x128xbf16>
    %c0_6 = arith.constant 0 : index
    %c0_7 = arith.constant 0 : index
    %58 = vector.load %arg4[%c0_6, %c0_7] : memref<128x128xbf16, #tpu.memory_space<vmem>>, vector<128x128xbf16>
    %cst_8 = arith.constant dense<0.000000e+00> : vector<16x128xf32>
    %59 = tpu.matmul %57, %58, %cst_8 {dimension_numbers = #tpu.dot_dimension_numbers<[1], [0], [0], [1], [0, 0, 1, 1], [], []>} : vector<16x128xbf16>, vector<128x128xbf16>, vector<16x128xf32> -> vector<16x128xf32>
    %c0_9 = arith.constant 0 : index
    %c0_10 = arith.constant 0 : index
    %60 = vector.load %arg5[%c0_9, %c0_10] : memref<1x128xf32, #tpu.memory_space<vmem>>, vector<1x128xf32>
    %61 = vector.broadcast %60 : vector<1x128xf32> to vector<16x128xf32>
    %62 = arith.addf %59, %61 : vector<16x128xf32>
    %c0_11 = arith.constant 0 : index
    %c0_12 = arith.constant 0 : index
    %63 = vector.load %arg6[%c0_11, %c0_12] : memref<16x128xf32, #tpu.memory_space<vmem>>, vector<16x128xf32>
    tpu.vector_store %arg6[%c0_11, %c0_12], %62 {strides = array<i32>} : memref<16x128xf32, #tpu.memory_space<vmem>>, vector<16x128xf32>,
    return
  }
  func.func @transform_0(%arg0: i32) -> (i32, i32) {
    %c0_i32 = arith.constant 0 : i32
    %c0_i32_0 = arith.constant 0 : i32
    return %arg0, %c0_i32 : i32, i32
  }
  func.func @transform_1(%arg0: i32) -> (i32, i32) {
    %c0_i32 = arith.constant 0 : i32
    %c0_i32_0 = arith.constant 0 : i32
    %c0_i32_1 = arith.constant 0 : i32
    return %c0_i32, %c0_i32_0 : i32, i32
  }
  func.func @transform_2(%arg0: i32) -> (i32, i32) {
    %c0_i32 = arith.constant 0 : i32
    %c0_i32_0 = arith.constant 0 : i32
    %c0_i32_1 = arith.constant 0 : i32
    return %c0_i32, %c0_i32_0 : i32, i32
  }
  func.func @transform_3(%arg0: i32) -> (i32, i32) {
    %c0_i32 = arith.constant 0 : i32
    %c0_i32_0 = arith.constant 0 : i32
    %c0_i32_1 = arith.constant 0 : i32
    return %c0_i32, %c0_i32_0 : i32, i32
  }
  func.func @transform_4(%arg0: i32) -> (i32, i32) {
    %c0_i32 = arith.constant 0 : i32
    %c0_i32_0 = arith.constant 0 : i32
    %c0_i32_1 = arith.constant 0 : i32
    return %c0_i32, %c0_i32_0 : i32, i32
  }
  func.func @transform_5(%arg0: i32) -> (i32, i32) {
    %c0_i32 = arith.constant 0 : i32
    %c0_i32_0 = arith.constant 0 : i32
    return %arg0, %c0_i32 : i32, i32
  }
}

</mosaic_0001>

<llo_original>
// kernel: tpu_custom_call.1
$region0: #{tpu_custom_call.1}
  #allocation0 [shape = 'u32[]', space=smem, size = 0x4, offset = 0x4, fixed_abs, tag = 'smem constant byte address 0x4 - core index']
  #allocation1 [shape = 'u32[144,128]{1,0:T(1,128)}', space=vmem, size = 0x12000, scoped, tag = 'internal scratch']
  %s0 = inlined_call_operand.vmem [shape: s32[16,8], index: 0, kind: input, shape index: {}]
  %s1 = inlined_call_operand.hbm [shape: bf16[128,128], index: 1, kind: input, shape index: {}]
  %s2 = inlined_call_operand.vmem [shape: f32[1,128], index: 2, kind: input, shape index: {}]
  %s3 = inlined_call_operand.hbm [shape: bf16[128,128], index: 3, kind: input, shape index: {}]
  %s4 = inlined_call_operand.vmem [shape: f32[1,128], index: 4, kind: input, shape index: {}]
  %s5 = inlined_call_operand.hbm [shape: f32[16,128], index: 5, kind: output, shape index: {}]
  %s6 = sld [smem:[#allocation0]]
  $region38: #{tpu_custom_call.1} parent=0
    _
  %s8 = ssub.s32 1, %s6
  %s9 = scalar_select 0, %s8, %s6
  $region1: #{tpu_custom_call.1} parent=0
    #allocation2 [shape = 'u8[32768]{0}', space=vmem, size = 0x8000, scoped, tag = 'input window, operand 1, single buffered']
    #allocation3 [shape = 's32[1]{0}', space=sflag, size = 0x4, scoped, tag = 'scoped memory for tpu_custom_call.1']
    #allocation4 [shape = 's32[1]{0}', space=sflag, size = 0x4, scoped, tag = 'scoped memory for tpu_custom_call.1']
    #allocation5 [shape = 'u8[32768]{0}', space=vmem, size = 0x8000, scoped, tag = 'input window, operand 3, single buffered']
    #allocation6 [shape = 's32[1]{0}', space=sflag, size = 0x4, scoped, tag = 'scoped memory for tpu_custom_call.1']
    #allocation7 [shape = 'u8[8192]{0}', space=vmem, size = 0x2000, scoped, tag = 'output window, operand 0, single buffered']
    %10 = vsyncpa [#allocation3], 0
    %11 = vsyncpa [#allocation6], 0
    %12 = vsyncpa [#allocation4], 0
    // Predicated region
    $region2: #{tpu_custom_call.1} parent=1 // pred_check
      _
    $region3: #{tpu_custom_call.1} parent=1 // pred_check_branch
      %14 = sbr.rel (0) target = $region5
    $region4: #{tpu_custom_call.1} parent=1 // pred_region
      _
    $region5: #{tpu_custom_call.1} parent=1 // pred_fallthru
      _
    // Predicated region
    $region6: #{tpu_custom_call.1} parent=1 // pred_check
      _
    $region7: #{tpu_custom_call.1} parent=1 // pred_check_branch
      %16 = sbr.rel (0) target = $region9
    $region8: #{tpu_custom_call.1} parent=1 // pred_region
      %s18 = ssub.s32 1024, 1024
      %19 = vsyncadd [#allocation3], %s18
      %s20 = sshll.u32 [#allocation2], 4
      %s21 = int_to_ptr.vmem [resolvable:$true] %s20
      %26 = dma.hbm_to_vmem [thread:$0]  %s1, 1024, %s21, [#allocation3], 64, 64, 4
    $region9: #{tpu_custom_call.1} parent=1 // pred_fallthru
      _
    // Predicated region
    $region10: #{tpu_custom_call.1} parent=1 // pred_check
      _
    $region11: #{tpu_custom_call.1} parent=1 // pred_check_branch
      %28 = sbr.rel (0) target = $region13
    $region12: #{tpu_custom_call.1} parent=1 // pred_region
      _
    $region13: #{tpu_custom_call.1} parent=1 // pred_fallthru
      _
    // Predicated region
    $region14: #{tpu_custom_call.1} parent=1 // pred_check
      _
    $region15: #{tpu_custom_call.1} parent=1 // pred_check_branch
      %30 = sbr.rel (0) target = $region17
    $region16: #{tpu_custom_call.1} parent=1 // pred_region
      %s32 = ssub.s32 1024, 1024
      %33 = vsyncadd [#allocation6], %s32
      %s34 = sshll.u32 [#allocation5], 4
      %s35 = int_to_ptr.vmem [resolvable:$true] %s34
      %40 = dma.hbm_to_vmem [thread:$0]  %s3, 1024, %s35, [#allocation6], 64, 64, 4
    $region17: #{tpu_custom_call.1} parent=1 // pred_fallthru
      _
    // Predicated region
    $region18: #{tpu_custom_call.1} parent=1 // pred_check
      _
    $region19: #{tpu_custom_call.1} parent=1 // pred_check_branch
      %42 = sbr.rel (0) target = $region21
    $region20: #{tpu_custom_call.1} parent=1 // pred_region
      _
    $region21: #{tpu_custom_call.1} parent=1 // pred_fallthru
      _
    // Predicated region
    $region22: #{tpu_custom_call.1} parent=1 // pred_check
      _
    $region23: #{tpu_custom_call.1} parent=1 // pred_check_branch
      %44 = sbr.rel (0) target = $region25
    $region24: #{tpu_custom_call.1} parent=1 // pred_region
      %45 = dma.done [#allocation3], 1024
    $region25: #{tpu_custom_call.1} parent=1 // pred_fallthru
      _
    // Predicated region
    $region26: #{tpu_custom_call.1} parent=1 // pred_check
      _
    $region27: #{tpu_custom_call.1} parent=1 // pred_check_branch
      %47 = sbr.rel (0) target = $region29
    $region28: #{tpu_custom_call.1} parent=1 // pred_region
      %48 = dma.done [#allocation6], 1024
    $region29: #{tpu_custom_call.1} parent=1 // pred_fallthru
      _
    %v50 = vld [vmem:[%s0] sm:$0xff]
    %v51 = vld [vmem:[%s0 + $0x8] sm:$0xff]
    %v52 = vlaneseq
    %v53 = vand.u32 %v52, 127
    %54 = vset.pattern.permute.xlu0 0
    %55 = vperm.xlu0 %54, %v50
    %v56 = vpop.permute.xlu0 %55
    %57 = vset.pattern.permute.xlu0 0
    %58 = vperm.xlu0 %57, %v51
    %v59 = vpop.permute.xlu0 %58
    %vm60 = vcmp.eq.s32.totalorder %v56, %v53
    %vm61 = vcmp.eq.s32.totalorder %v59, %v53
    %v62 = vsel %vm60, 1, 0
    %v63 = vsel %vm61, 1, 0
    %v64 = vcvt.s32.f32 %v62
    %v65 = vcvt.s32.f32 %v63
    %66 = vset.pattern.permute.xlu0 1
    %67 = vperm.xlu0 %66, %v50
    %v68 = vpop.permute.xlu0 %67
    %69 = vset.pattern.permute.xlu0 1
    %70 = vperm.xlu0 %69, %v51
    %v71 = vpop.permute.xlu0 %70
    %vm72 = vcmp.eq.s32.totalorder %v68, %v53
    %vm73 = vcmp.eq.s32.totalorder %v71, %v53
    %v74 = vsel %vm72, 1, 0
    %v75 = vsel %vm73, 1, 0
    %v76 = vcvt.s32.f32 %v74
    %v77 = vcvt.s32.f32 %v75
    %v78 = vadd.f32 %v64, %v76
    %v79 = vadd.f32 %v65, %v77
    %80 = vset.pattern.permute.xlu0 2
    %81 = vperm.xlu0 %80, %v50
    %v82 = vpop.permute.xlu0 %81
    %83 = vset.pattern.permute.xlu0 2
    %84 = vperm.xlu0 %83, %v51
    %v85 = vpop.permute.xlu0 %84
    %vm86 = vcmp.eq.s32.totalorder %v82, %v53
    %vm87 = vcmp.eq.s32.totalorder %v85, %v53
    %v88 = vsel %vm86, 1, 0
    %v89 = vsel %vm87, 1, 0
    %v90 = vcvt.s32.f32 %v88
    %v91 = vcvt.s32.f32 %v89
    %v92 = vadd.f32 %v78, %v90
    %v93 = vadd.f32 %v79, %v91
    %94 = vset.pattern.permute.xlu0 3
    %95 = vperm.xlu0 %94, %v50
    %v96 = vpop.permute.xlu0 %95
    %97 = vset.pattern.permute.xlu0 3
    %98 = vperm.xlu0 %97, %v51
    %v99 = vpop.permute.xlu0 %98
    %vm100 = vcmp.eq.s32.totalorder %v96, %v53
    %vm101 = vcmp.eq.s32.totalorder %v99, %v53
    %v102 = vsel %vm100, 1, 0
    %v103 = vsel %vm101, 1, 0
    %v104 = vcvt.s32.f32 %v102
    %v105 = vcvt.s32.f32 %v103
    %v106 = vadd.f32 %v92, %v104
    %v107 = vadd.f32 %v93, %v105
    %108 = vset.pattern.permute.xlu0 4
    %109 = vperm.xlu0 %108, %v50
    %v110 = vpop.permute.xlu0 %109
    %111 = vset.pattern.permute.xlu0 4
    %112 = vperm.xlu0 %111, %v51
    %v113 = vpop.permute.xlu0 %112
    %vm114 = vcmp.eq.s32.totalorder %v110, %v53
    %vm115 = vcmp.eq.s32.totalorder %v113, %v53
    %v116 = vsel %vm114, 1, 0
    %v117 = vsel %vm115, 1, 0
    %v118 = vcvt.s32.f32 %v116
    %v119 = vcvt.s32.f32 %v117
    %v120 = vadd.f32 %v106, %v118
    %v121 = vadd.f32 %v107, %v119
    %122 = vset.pattern.permute.xlu0 5
    %123 = vperm.xlu0 %122, %v50
    %v124 = vpop.permute.xlu0 %123
    %125 = vset.pattern.permute.xlu0 5
    %126 = vperm.xlu0 %125, %v51
    %v127 = vpop.permute.xlu0 %126
    %vm128 = vcmp.eq.s32.totalorder %v124, %v53
    %vm129 = vcmp.eq.s32.totalorder %v127, %v53
    %v130 = vsel %vm128, 1, 0
    %v131 = vsel %vm129, 1, 0
    %v132 = vcvt.s32.f32 %v130
    %v133 = vcvt.s32.f32 %v131
    %v134 = vadd.f32 %v120, %v132
    %v135 = vadd.f32 %v121, %v133
    %136 = vset.pattern.permute.xlu0 6
    %137 = vperm.xlu0 %136, %v50
    %v138 = vpop.permute.xlu0 %137
    %139 = vset.pattern.permute.xlu0 6
    %140 = vperm.xlu0 %139, %v51
    %v141 = vpop.permute.xlu0 %140
    %vm142 = vcmp.eq.s32.totalorder %v138, %v53
    %vm143 = vcmp.eq.s32.totalorder %v141, %v53
    %v144 = vsel %vm142, 1, 0
    %v145 = vsel %vm143, 1, 0
    %v146 = vcvt.s32.f32 %v144
    %v147 = vcvt.s32.f32 %v145
    %v148 = vadd.f32 %v134, %v146
    %v149 = vadd.f32 %v135, %v147
    %150 = vset.pattern.permute.xlu0 7
    %151 = vperm.xlu0 %150, %v50
    %v152 = vpop.permute.xlu0 %151
    %153 = vset.pattern.permute.xlu0 7
    %154 = vperm.xlu0 %153, %v51
    %v155 = vpop.permute.xlu0 %154
    %vm156 = vcmp.eq.s32.totalorder %v152, %v53
    %vm157 = vcmp.eq.s32.totalorder %v155, %v53
    %v158 = vsel %vm156, 1, 0
    %v159 = vsel %vm157, 1, 0
    %v160 = vcvt.s32.f32 %v158
    %v161 = vcvt.s32.f32 %v159
    %v162 = vadd.f32 %v148, %v160
    %v163 = vadd.f32 %v149, %v161
    %v164 = vpack.c.bf16 %v163, %v162
    %v165 = vld [vmem:[#allocation2] sm:$0xf]
    %v166 = vld [vmem:[#allocation2 + $0x4] sm:$0xf]
    %v167 = vld [vmem:[#allocation2 + $0x8] sm:$0xf]
    %v168 = vld [vmem:[#allocation2 + $0xc] sm:$0xf]
    %v169 = vld [vmem:[#allocation2 + $0x10] sm:$0xf]
    %v170 = vld [vmem:[#allocation2 + $0x14] sm:$0xf]
    %v171 = vld [vmem:[#allocation2 + $0x18] sm:$0xf]
    %v172 = vld [vmem:[#allocation2 + $0x1c] sm:$0xf]
    %v173 = vld [vmem:[#allocation2 + $0x20] sm:$0xf]
    %v174 = vld [vmem:[#allocation2 + $0x24] sm:$0xf]
    %v175 = vld [vmem:[#allocation2 + $0x28] sm:$0xf]
    %v176 = vld [vmem:[#allocation2 + $0x2c] sm:$0xf]
    %v177 = vld [vmem:[#allocation2 + $0x30] sm:$0xf]
    %v178 = vld [vmem:[#allocation2 + $0x34] sm:$0xf]
    %v179 = vld [vmem:[#allocation2 + $0x38] sm:$0xf]
    %v180 = vld [vmem:[#allocation2 + $0x3c] sm:$0xf]
    %v181 = vld [vmem:[%s2] sm:$0x1]
    %v183 = vlaneseq
    %v184 = vshrl.u32 %v183, 7
    %v185 = vsub.s32 0, %v184
    %v186 = vrot.slane %v181, %v185
    %v204 = vunpack.c.l.b16 %v165
    %v205 = vunpack.c.l.b16 %v166
    %v206 = vunpack.c.l.b16 %v167
    %v207 = vunpack.c.l.b16 %v168
    %v208 = vunpack.c.l.b16 %v169
    %v209 = vunpack.c.l.b16 %v170
    %v210 = vunpack.c.l.b16 %v171
    %v211 = vunpack.c.l.b16 %v172
    %v212 = vunpack.c.l.b16 %v173
    %v213 = vunpack.c.l.b16 %v174
    %v214 = vunpack.c.l.b16 %v175
    %v215 = vunpack.c.l.b16 %v176
    %v216 = vunpack.c.l.b16 %v177
    %v217 = vunpack.c.l.b16 %v178
    %v218 = vunpack.c.l.b16 %v179
    %v219 = vunpack.c.l.b16 %v180
    %v220 = vpack.c.b16 %v205, %v204
    %v221 = vpack.c.b16 %v207, %v206
    %v222 = vpack.c.b16 %v209, %v208
    %v223 = vpack.c.b16 %v211, %v210
    %v224 = vpack.c.b16 %v213, %v212
    %v225 = vpack.c.b16 %v215, %v214
    %v226 = vpack.c.b16 %v217, %v216
    %v227 = vpack.c.b16 %v219, %v218
    %236 = vmatprep.subr.bf16.mxu0 0
    %237 = vmatpush1.bf16.msra.mxu0 %v220
    %238 = vmatprep.subr.bf16.mxu0 0
    %239 = vmatpush1.bf16.msra.mxu0 %v221
    %240 = vmatprep.subr.bf16.mxu0 0
    %241 = vmatpush1.bf16.msra.mxu0 %v222
    %242 = vmatprep.subr.bf16.mxu0 0
    %243 = vmatpush1.bf16.msra.mxu0 %v223
    %244 = vmatprep.subr.bf16.mxu0 0
    %245 = vmatpush1.bf16.msra.mxu0 %v224
    %246 = vmatprep.subr.bf16.mxu0 0
    %247 = vmatpush1.bf16.msra.mxu0 %v225
    %248 = vmatprep.subr.bf16.mxu0 0
    %249 = vmatpush1.bf16.msra.mxu0 %v226
    %250 = vmatprep.subr.bf16.mxu0 0
    %251 = vmatpush1.bf16.msra.mxu0 %v227
    %252 = vmatprep.subr.bf16.mxu0 0
    %253 = vmatpush1.bf16.msra.mxu0 0
    %254 = vmatprep.subr.bf16.mxu0 0
    %255 = vmatpush1.bf16.msra.mxu0 0
    %256 = vmatprep.subr.bf16.mxu0 0
    %257 = vmatpush1.bf16.msra.mxu0 0
    %258 = vmatprep.subr.bf16.mxu0 0
    %259 = vmatpush1.bf16.msra.mxu0 0
    %260 = vmatprep.subr.bf16.mxu0 0
    %261 = vmatpush1.bf16.msra.mxu0 0
    %262 = vmatprep.subr.bf16.mxu0 0
    %263 = vmatpush1.bf16.msra.mxu0 0
    %264 = vmatprep.subr.bf16.mxu0 0
    %265 = vmatpush1.bf16.msra.mxu0 0
    %266 = vmatprep.subr.bf16.mxu0 0
    %267 = vmatpush1.bf16.msra.mxu0 0
    %268 = vmatprep.mubr.bf16.mxu0 0
    %269 = vmatmul.mubr.bf16.gmra.mrb[0].mxu0 %v164
    %v270 = vpop.f32.mrb[0].mxu0
    %v271 = vadd.f32 %v186, %v270
    %v272 = vpop.f32.mrb[0].mxu0
    %v273 = vpop.f32.mrb[0].mxu0
    %v274 = vadd.f32 %v186, %v273
    %v275 = vpop.f32.mrb[0].mxu0
    %276 = vdwg.mxu0
    %v277 = vmax.f32 %v271, 0.0
    %v278 = vmax.f32 %v274, 0.0
    %v279 = vpack.c.bf16 %v278, %v277
    %v280 = vld [vmem:[#allocation5] sm:$0xf]
    %v281 = vld [vmem:[#allocation5 + $0x4] sm:$0xf]
    %v282 = vld [vmem:[#allocation5 + $0x8] sm:$0xf]
    %v283 = vld [vmem:[#allocation5 + $0xc] sm:$0xf]
    %v284 = vld [vmem:[#allocation5 + $0x10] sm:$0xf]
    %v285 = vld [vmem:[#allocation5 + $0x14] sm:$0xf]
    %v286 = vld [vmem:[#allocation5 + $0x18] sm:$0xf]
    %v287 = vld [vmem:[#allocation5 + $0x1c] sm:$0xf]
    %v288 = vld [vmem:[#allocation5 + $0x20] sm:$0xf]
    %v289 = vld [vmem:[#allocation5 + $0x24] sm:$0xf]
    %v290 = vld [vmem:[#allocation5 + $0x28] sm:$0xf]
    %v291 = vld [vmem:[#allocation5 + $0x2c] sm:$0xf]
    %v292 = vld [vmem:[#allocation5 + $0x30] sm:$0xf]
    %v293 = vld [vmem:[#allocation5 + $0x34] sm:$0xf]
    %v294 = vld [vmem:[#allocation5 + $0x38] sm:$0xf]
    %v295 = vld [vmem:[#allocation5 + $0x3c] sm:$0xf]
    %v296 = vld [vmem:[%s4] sm:$0x1]
    %v298 = vlaneseq
    %v299 = vshrl.u32 %v298, 7
    %v300 = vsub.s32 0, %v299
    %v301 = vrot.slane %v296, %v300
    %v319 = vunpack.c.l.b16 %v280
    %v320 = vunpack.c.l.b16 %v281
    %v321 = vunpack.c.l.b16 %v282
    %v322 = vunpack.c.l.b16 %v283
    %v323 = vunpack.c.l.b16 %v284
    %v324 = vunpack.c.l.b16 %v285
    %v325 = vunpack.c.l.b16 %v286
    %v326 = vunpack.c.l.b16 %v287
    %v327 = vunpack.c.l.b16 %v288
    %v328 = vunpack.c.l.b16 %v289
    %v329 = vunpack.c.l.b16 %v290
    %v330 = vunpack.c.l.b16 %v291
    %v331 = vunpack.c.l.b16 %v292
    %v332 = vunpack.c.l.b16 %v293
    %v333 = vunpack.c.l.b16 %v294
    %v334 = vunpack.c.l.b16 %v295
    %v335 = vpack.c.b16 %v320, %v319
    %v336 = vpack.c.b16 %v322, %v321
    %v337 = vpack.c.b16 %v324, %v323
    %v338 = vpack.c.b16 %v326, %v325
    %v339 = vpack.c.b16 %v328, %v327
    %v340 = vpack.c.b16 %v330, %v329
    %v341 = vpack.c.b16 %v332, %v331
    %v342 = vpack.c.b16 %v334, %v333
    %351 = vmatprep.subr.bf16.mxu0 0
    %352 = vmatpush1.bf16.msra.mxu0 %v335
    %353 = vmatprep.subr.bf16.mxu0 0
    %354 = vmatpush1.bf16.msra.mxu0 %v336
    %355 = vmatprep.subr.bf16.mxu0 0
    %356 = vmatpush1.bf16.msra.mxu0 %v337
    %357 = vmatprep.subr.bf16.mxu0 0
    %358 = vmatpush1.bf16.msra.mxu0 %v338
    %359 = vmatprep.subr.bf16.mxu0 0
    %360 = vmatpush1.bf16.msra.mxu0 %v339
    %361 = vmatprep.subr.bf16.mxu0 0
    %362 = vmatpush1.bf16.msra.mxu0 %v340
    %363 = vmatprep.subr.bf16.mxu0 0
    %364 = vmatpush1.bf16.msra.mxu0 %v341
    %365 = vmatprep.subr.bf16.mxu0 0
    %366 = vmatpush1.bf16.msra.mxu0 %v342
    %367 = vmatprep.subr.bf16.mxu0 0
    %368 = vmatpush1.bf16.msra.mxu0 0
    %369 = vmatprep.subr.bf16.mxu0 0
    %370 = vmatpush1.bf16.msra.mxu0 0
    %371 = vmatprep.subr.bf16.mxu0 0
    %372 = vmatpush1.bf16.msra.mxu0 0
    %373 = vmatprep.subr.bf16.mxu0 0
    %374 = vmatpush1.bf16.msra.mxu0 0
    %375 = vmatprep.subr.bf16.mxu0 0
    %376 = vmatpush1.bf16.msra.mxu0 0
    %377 = vmatprep.subr.bf16.mxu0 0
    %378 = vmatpush1.bf16.msra.mxu0 0
    %379 = vmatprep.subr.bf16.mxu0 0
    %380 = vmatpush1.bf16.msra.mxu0 0
    %381 = vmatprep.subr.bf16.mxu0 0
    %382 = vmatpush1.bf16.msra.mxu0 0
    %383 = vmatprep.mubr.bf16.mxu0 0
    %384 = vmatmul.mubr.bf16.gmra.mrb[0].mxu0 %v279
    %v385 = vpop.f32.mrb[0].mxu0
    %v386 = vadd.f32 %v301, %v385
    %v387 = vpop.f32.mrb[0].mxu0
    %v388 = vpop.f32.mrb[0].mxu0
    %v389 = vadd.f32 %v301, %v388
    %v390 = vpop.f32.mrb[0].mxu0
    %391 = vdwg.mxu0
    %392 = vst [vmem:[#allocation7] sm:$0xff] %v386
    %393 = vst [vmem:[#allocation7 + $0x8] sm:$0xff] %v389
    // Predicated region
    $region30: #{tpu_custom_call.1} parent=1 // pred_check
      _
    $region31: #{tpu_custom_call.1} parent=1 // pred_check_branch
      %395 = sbr.rel (0) target = $region33
    $region32: #{tpu_custom_call.1} parent=1 // pred_region
      %s397 = ssub.s32 256, 256
      %398 = vsyncadd [#allocation4], %s397
      %s399 = sshll.u32 [#allocation7], 4
      %s400 = int_to_ptr.vmem [resolvable:$true] %s399
      %405 = dma.vmem_to_hbm [thread:$0]  %s400, 256, %s5, [#allocation4], 128, 128, 8
    $region33: #{tpu_custom_call.1} parent=1 // pred_fallthru
      _
    // Predicated region
    $region34: #{tpu_custom_call.1} parent=1 // pred_check
      _
    $region35: #{tpu_custom_call.1} parent=1 // pred_check_branch
      %407 = sbr.rel (0) target = $region37
    $region36: #{tpu_custom_call.1} parent=1 // pred_region
      %408 = dma.done [#allocation4], 256
    $region37: #{tpu_custom_call.1} parent=1 // pred_fallthru
      _
    %409 = vsyncpa [#allocation3], 1
    %410 = vsyncpa [#allocation6], 1
    %411 = vsyncpa [#allocation4], 1

</llo_original>
